<compile_context>
chip_gen: v6e
topology: v6e:2x2x1
jax: 0.10.0
libtpu: 0.0.40
codegen_flags: <defaults>
</compile_context>

<pallas_src>
import jax
import jax.numpy as jnp
import numpy as np
from jax.experimental import pallas as pl
from jax.experimental.pallas import tpu as pltpu


# ----------------------------------------------------------------------------
# Kernel: fused 4-MLP dueling critic.  4 MXU passes total, one (B, 2) store.
# ----------------------------------------------------------------------------
def retrace_critic_kernel(obs_ref, act_ref,
                          w0o_ref, w0a_ref, b0_ref,
                          w1_ref, b1_ref,
                          w2_ref, b2_ref,
                          q_ref):
    obs = obs_ref[...].astype(jnp.bfloat16)
    act = act_ref[...].astype(jnp.bfloat16)

    # Layer 0 packed over the 4 nets (N = 4*hidden).  V-net action columns of
    # w0a are zero, so every net effectively consumes [obs, action] and obs is
    # shipped only once (no wrapper-side concat).
    h = (jnp.dot(obs, w0o_ref[...], preferred_element_type=jnp.float32)
         + jnp.dot(act, w0a_ref[...], preferred_element_type=jnp.float32)
         + b0_ref[...])
    h = jnp.maximum(h, 0.0)                      # f32 VPU

    # Layer 1: block-diagonal (4H, 4H).
    h = (jnp.dot(h.astype(jnp.bfloat16), w1_ref[...],
                 preferred_element_type=jnp.float32) + b1_ref[...])
    h = jnp.maximum(h, 0.0)

    # Layer 2 + dueling combine, folded into the (4H, 2) head slab:
    #   col 0 = q1 = a1 + v1, col 1 = q2 = a2 + v2.
    q_ref[...] = (jnp.dot(h.astype(jnp.bfloat16), w2_ref[...],
                          preferred_element_type=jnp.float32) + b2_ref[...])


# ----------------------------------------------------------------------------
# Parameter construction / packing (wrapper-side, one-time).
# ----------------------------------------------------------------------------
def make_mlp_params(key, in_dim, hidden_dim, out_dim, scale=0.1):
    """Deterministic init for utils.mlp(in_dim, hidden_dim, out_dim, depth=2)."""
    k = jax.random.split(key, 6)
    w0 = scale * jax.random.normal(k[0], (in_dim, hidden_dim), jnp.float32)
    b0 = scale * jax.random.normal(k[1], (1, hidden_dim), jnp.float32)
    w1 = scale * jax.random.normal(k[2], (hidden_dim, hidden_dim), jnp.float32)
    b1 = scale * jax.random.normal(k[3], (1, hidden_dim), jnp.float32)
    w2 = scale * jax.random.normal(k[4], (hidden_dim, out_dim), jnp.float32)
    b2 = scale * jax.random.normal(k[5], (1, out_dim), jnp.float32)
    return (w0, b0, w1, b1, w2, b2)


def pack_params(params_a1, params_v1, params_a2, params_v2,
                obs_dim, action_dim, hidden_dim):
    """Pack the 4 MLPs into 3 wide bf16 weight slabs + f32 bias rows.

    Net order inside the packed hidden dim is [A1, A2, V1, V2].  The head slab
    w2 is (4H, 2): column 0 carries A1 and V1 head weights on their disjoint
    row blocks, column 1 carries A2 and V2, so the dueling combine q = A + V is
    computed by the matmul itself (no post-hoc slice+add).
    """
    H = hidden_dim
    nets = (params_a1, params_a2, params_v1, params_v2)
    # Which q column each net contributes to: A1->0, A2->1, V1->0, V2->1.
    net_col = (0, 1, 0, 1)

    w0_obs = np.zeros((obs_dim, 4 * H), np.float32)
    w0_act = np.zeros((action_dim, 4 * H), np.float32)
    b0 = np.zeros((1, 4 * H), np.float32)
    w1 = np.zeros((4 * H, 4 * H), np.float32)
    b1 = np.zeros((1, 4 * H), np.float32)
    w2 = np.zeros((4 * H, 2), np.float32)
    b2 = np.zeros((1, 2), np.float32)

    for k, p in enumerate(nets):
        pw0, pb0, pw1, pb1, pw2, pb2 = (np.asarray(a) for a in p)
        sl = slice(k * H, (k + 1) * H)
        w0_obs[:, sl] = pw0[:obs_dim]
        if pw0.shape[0] > obs_dim:        # A nets consume [obs, action]
            w0_act[:, sl] = pw0[obs_dim:]  # V nets: action columns stay zero
        b0[:, sl] = pb0
        w1[sl, sl] = pw1
        b1[:, sl] = pb1
        c = net_col[k]
        w2[sl, c:c + 1] = pw2              # disjoint row support per net
        b2[0, c] += pb2[0, 0]              # summed head biases per q column
    bf16 = lambda a: jnp.asarray(a, jnp.bfloat16)
    f32 = lambda a: jnp.asarray(a, jnp.float32)
    return (bf16(w0_obs), bf16(w0_act), f32(b0),
            bf16(w1), f32(b1),
            bf16(w2), f32(b2))


# ----------------------------------------------------------------------------
# Forward wrapper.
# ----------------------------------------------------------------------------
def _grid_vmem_bytes(tb, obs_dim, action_dim, h4, packed):
    """Conservative scoped-VMEM estimate for the batch-tiled grid path."""
    weight_bytes = sum(int(np.prod(a.shape)) * a.dtype.itemsize for a in packed)
    # Double-buffered activation tiles (f32 in, f32 out).
    io_bytes = 2 * (tb * obs_dim * 4 + tb * action_dim * 4 + tb * 2 * 4)
    # Per-layer (tb, 4H) f32 + bf16 intermediates, with generous slack.
    inter_bytes = 12 * tb * h4 * 4
    return int(weight_bytes + io_bytes + inter_bytes + (8 << 20))


def retrace_critic_forward(obs, action, packed, *, batch_tile=2048):
    """Returns a lane-merged (B, 2) array: q1 = q[:, 0:1], q2 = q[:, 1:2]."""
    B = obs.shape[0]
    assert action.shape[0] == B
    obs_dim = obs.shape[1]
    action_dim = action.shape[1]
    h4 = packed[2].shape[1]  # 4 * hidden_dim
    inputs_tail = tuple(packed)

    # Small / medium batch: grid=() — no per-step pipeline bookkeeping; the
    # whole problem (weights ~40 KiB bf16 + (B, 4H) f32 activations) lives in
    # VMEM comfortably up to a few thousand rows on every generation.
    if B < 2 * batch_tile:
        return pl.pallas_call(
            retrace_critic_kernel,
            out_shape=jax.ShapeDtypeStruct((B, 2), jnp.float32),
        )(obs, action, *inputs_tail)

    # Large batch: batch-tiled grid.  Weights are VMEM-resident across steps,
    # the batch axis is "parallel" (megacore-sharded on v7x).  Pad to a
    # multiple of batch_tile (cdiv, no silent fallback for ragged B) and keep
    # the step count even so both v7x TensorCores get balanced work.
    tb = batch_tile
    n_steps = pl.cdiv(B, tb)
    if n_steps % 2:
        n_steps += 1
    B_pad = n_steps * tb
    if B_pad != B:
        pad = B_pad - B
        obs_p = jnp.pad(obs, ((0, pad), (0, 0)))
        act_p = jnp.pad(action, ((0, pad), (0, 0)))
    else:
        obs_p, act_p = obs, action

    def batch_spec(ncols):
        return pl.BlockSpec((tb, ncols), lambda i: (i, 0))

    def resident_spec(arr):
        nd = arr.ndim
        return pl.BlockSpec(arr.shape, lambda i, _nd=nd: (0,) * _nd)

    in_specs = [batch_spec(obs_dim), batch_spec(action_dim)]
    in_specs += [resident_spec(a) for a in inputs_tail]
    out_specs = pl.BlockSpec((tb, 2), lambda i: (i, 0))

    q = pl.pallas_call(
        retrace_critic_kernel,
        out_shape=jax.ShapeDtypeStruct((B_pad, 2), jnp.float32),
        grid=(n_steps,),
        in_specs=in_specs,
        out_specs=out_specs,
        compiler_params=pltpu.CompilerParams(
            dimension_semantics=("parallel",),
            vmem_limit_bytes=_grid_vmem_bytes(tb, obs_dim, action_dim, h4,
                                              packed)),
    )(obs_p, act_p, *inputs_tail)

    return q[:B] if B_pad != B else q


# ----------------------------------------------------------------------------
# Pure-JAX f32 reference (original module semantics).
# ----------------------------------------------------------------------------
def _mlp3_f32(x, w0, b0, w1, b1, w2, b2):
    h = jnp.maximum(jnp.dot(x, w0) + b0, 0.0)
    h = jnp.maximum(jnp.dot(h, w1) + b1, 0.0)
    return jnp.dot(h, w2) + b2


def reference_forward(obs, action, params_a1, params_v1, params_a2, params_v2):
    oa = jnp.concatenate([obs, action], axis=-1)
    a1 = _mlp3_f32(oa, *params_a1)
    v1 = _mlp3_f32(obs, *params_v1)
    a2 = _mlp3_f32(oa, *params_a2)
    v2 = _mlp3_f32(obs, *params_v2)
    return a1 + v1, a2 + v2


def _check(q, r1, r2, rtol=2e-2, atol=1e-2):
    # bf16 MXU operands vs pure-f32 reference -> relaxed tolerance (sized for
    # hidden_dim=32 / scale=0.1; re-derive if those grow).
    np.testing.assert_allclose(np.asarray(q[:, 0:1]), np.asarray(r1),
                               rtol=rtol, atol=atol)
    np.testing.assert_allclose(np.asarray(q[:, 1:2]), np.asarray(r2),
                               rtol=rtol, atol=atol)


if __name__ == "__main__":
    obs_dim, action_dim, hidden_dim = 16, 8, 32  # hidden_depth = 2

    key = jax.random.PRNGKey(0)
    k_obs, k_act, k_a1, k_v1, k_a2, k_v2, k_big = jax.random.split(key, 7)

    params_a1 = make_mlp_params(k_a1, obs_dim + action_dim, hidden_dim, 1)
    params_v1 = make_mlp_params(k_v1, obs_dim, hidden_dim, 1)
    params_a2 = make_mlp_params(k_a2, obs_dim + action_dim, hidden_dim, 1)
    params_v2 = make_mlp_params(k_v2, obs_dim, hidden_dim, 1)
    packed = pack_params(params_a1, params_v1, params_a2, params_v2,
                         obs_dim, action_dim, hidden_dim)

    # ---- small batch: grid=() path ------------------------------------------
    B = 8
    obs = jax.random.normal(k_obs, (B, obs_dim), jnp.float32)
    action = jax.random.normal(k_act, (B, action_dim), jnp.float32)

    q = retrace_critic_forward(obs, action, packed)
    jax.block_until_ready(q)
    r1, r2 = reference_forward(obs, action,
                               params_a1, params_v1, params_a2, params_v2)
    _check(q, r1, r2)

    # ---- medium batch (512): now also the grid=() path ------------------------
    Bm = 512
    km1, km2 = jax.random.split(k_big)
    obs_m = jax.random.normal(km1, (Bm, obs_dim), jnp.float32)
    act_m = jax.random.normal(km2, (Bm, action_dim), jnp.float32)
    q_m = retrace_critic_forward(obs_m, act_m, packed)
    jax.block_until_ready(q_m)
    r1m, r2m = reference_forward(obs_m, act_m,
                                 params_a1, params_v1, params_a2, params_v2)
    _check(q_m, r1m, r2m)

    # ---- large ragged batch: padded, even-step, batch-tiled "parallel" grid ---
    Bb = 5000  # not a multiple of the tile -> exercises cdiv + padding path
    kb1, kb2 = jax.random.split(km2)
    obs_b = jax.random.normal(kb1, (Bb, obs_dim), jnp.float32)
    act_b = jax.random.normal(kb2, (Bb, action_dim), jnp.float32)
    q_b = retrace_critic_forward(obs_b, act_b, packed, batch_tile=2048)
    jax.block_until_ready(q_b)
    r1b, r2b = reference_forward(obs_b, act_b,
                                 params_a1, params_v1, params_a2, params_v2)
    _check(q_b, r1b, r2b)

    print("KERNEL_OK")
</pallas_src>

<mosaic_0001>
module attributes {stable_mosaic.version = 11 : i64} {
  func.func @retrace_critic_kernel(%arg0: memref<8x16xf32, #tpu.memory_space<vmem>>, %arg1: memref<8x8xf32, #tpu.memory_space<vmem>>, %arg2: memref<16x128xbf16, #tpu.memory_space<vmem>>, %arg3: memref<8x128xbf16, #tpu.memory_space<vmem>>, %arg4: memref<1x128xf32, #tpu.memory_space<vmem>>, %arg5: memref<128x128xbf16, #tpu.memory_space<vmem>>, %arg6: memref<1x128xf32, #tpu.memory_space<vmem>>, %arg7: memref<128x2xbf16, #tpu.memory_space<vmem>>, %arg8: memref<1x2xf32, #tpu.memory_space<vmem>>, %arg9: memref<8x2xf32, #tpu.memory_space<vmem>>) attributes {dimension_semantics = [], scalar_prefetch = 0 : i64, scratch_operands = 0 : i64, tpu.core_type = #tpu.core_type<tc>} {
    %c0 = arith.constant 0 : index
    %c0_0 = arith.constant 0 : index
    %0 = vector.load %arg0[%c0, %c0_0] : memref<8x16xf32, #tpu.memory_space<vmem>>, vector<8x16xf32>
    %1 = arith.truncf %0 : vector<8x16xf32> to vector<8x16xbf16>
    %c0_1 = arith.constant 0 : index
    %c0_2 = arith.constant 0 : index
    %2 = vector.load %arg1[%c0_1, %c0_2] : memref<8x8xf32, #tpu.memory_space<vmem>>, vector<8x8xf32>
    %3 = arith.truncf %2 : vector<8x8xf32> to vector<8x8xbf16>
    %c0_3 = arith.constant 0 : index
    %c0_4 = arith.constant 0 : index
    %4 = vector.load %arg2[%c0_3, %c0_4] : memref<16x128xbf16, #tpu.memory_space<vmem>>, vector<16x128xbf16>
    %cst = arith.constant dense<0.000000e+00> : vector<8x128xf32>
    %5 = tpu.matmul %1, %4, %cst {dimension_numbers = #tpu.dot_dimension_numbers<[1], [0], [0], [1], [0, 0, 1, 1], [], []>} : vector<8x16xbf16>, vector<16x128xbf16>, vector<8x128xf32> -> vector<8x128xf32>
    %c0_5 = arith.constant 0 : index
    %c0_6 = arith.constant 0 : index
    %6 = vector.load %arg3[%c0_5, %c0_6] : memref<8x128xbf16, #tpu.memory_space<vmem>>, vector<8x128xbf16>
    %cst_7 = arith.constant dense<0.000000e+00> : vector<8x128xf32>
    %7 = tpu.matmul %3, %6, %cst_7 {dimension_numbers = #tpu.dot_dimension_numbers<[1], [0], [0], [1], [0, 0, 1, 1], [], []>} : vector<8x8xbf16>, vector<8x128xbf16>, vector<8x128xf32> -> vector<8x128xf32>
    %8 = arith.addf %5, %7 : vector<8x128xf32>
    %c0_8 = arith.constant 0 : index
    %c0_9 = arith.constant 0 : index
    %9 = vector.load %arg4[%c0_8, %c0_9] : memref<1x128xf32, #tpu.memory_space<vmem>>, vector<1x128xf32>
    %10 = vector.broadcast %9 : vector<1x128xf32> to vector<8x128xf32>
    %11 = arith.addf %8, %10 : vector<8x128xf32>
    %cst_10 = arith.constant 0.000000e+00 : f32
    %12 = vector.broadcast %cst_10 : f32 to vector<8x128xf32>
    %13 = arith.maximumf %11, %12 : vector<8x128xf32>
    %14 = arith.truncf %13 : vector<8x128xf32> to vector<8x128xbf16>
    %c0_11 = arith.constant 0 : index
    %c0_12 = arith.constant 0 : index
    %15 = vector.load %arg5[%c0_11, %c0_12] : memref<128x128xbf16, #tpu.memory_space<vmem>>, vector<128x128xbf16>
    %cst_13 = arith.constant dense<0.000000e+00> : vector<8x128xf32>
    %16 = tpu.matmul %14, %15, %cst_13 {dimension_numbers = #tpu.dot_dimension_numbers<[1], [0], [0], [1], [0, 0, 1, 1], [], []>} : vector<8x128xbf16>, vector<128x128xbf16>, vector<8x128xf32> -> vector<8x128xf32>
    %c0_14 = arith.constant 0 : index
    %c0_15 = arith.constant 0 : index
    %17 = vector.load %arg6[%c0_14, %c0_15] : memref<1x128xf32, #tpu.memory_space<vmem>>, vector<1x128xf32>
    %18 = vector.broadcast %17 : vector<1x128xf32> to vector<8x128xf32>
    %19 = arith.addf %16, %18 : vector<8x128xf32>
    %cst_16 = arith.constant 0.000000e+00 : f32
    %20 = vector.broadcast %cst_16 : f32 to vector<8x128xf32>
    %21 = arith.maximumf %19, %20 : vector<8x128xf32>
    %22 = arith.truncf %21 : vector<8x128xf32> to vector<8x128xbf16>
    %c0_17 = arith.constant 0 : index
    %c0_18 = arith.constant 0 : index
    %23 = vector.load %arg7[%c0_17, %c0_18] : memref<128x2xbf16, #tpu.memory_space<vmem>>, vector<128x2xbf16>
    %cst_19 = arith.constant dense<0.000000e+00> : vector<8x2xf32>
    %24 = tpu.matmul %22, %23, %cst_19 {dimension_numbers = #tpu.dot_dimension_numbers<[1], [0], [0], [1], [0, 0, 1, 1], [], []>} : vector<8x128xbf16>, vector<128x2xbf16>, vector<8x2xf32> -> vector<8x2xf32>
    %c0_20 = arith.constant 0 : index
    %c0_21 = arith.constant 0 : index
    %25 = vector.load %arg8[%c0_20, %c0_21] : memref<1x2xf32, #tpu.memory_space<vmem>>, vector<1x2xf32>
    %26 = vector.broadcast %25 : vector<1x2xf32> to vector<8x2xf32>
    %27 = arith.addf %24, %26 : vector<8x2xf32>
    %c0_22 = arith.constant 0 : index
    %c0_23 = arith.constant 0 : index
    %28 = vector.load %arg9[%c0_22, %c0_23] : memref<8x2xf32, #tpu.memory_space<vmem>>, vector<8x2xf32>
    tpu.vector_store %arg9[%c0_22, %c0_23], %27 {strides = array<i32>} : memref<8x2xf32, #tpu.memory_space<vmem>>, vector<8x2xf32>,
    return
  }
}

</mosaic_0001>

<llo_original>
// kernel: tpu_custom_call.1
$region0: #{tpu_custom_call.1}
  #allocation0 [shape = 'u32[]', space=smem, size = 0x4, offset = 0x4, fixed_abs, tag = 'smem constant byte address 0x4 - core index']
  #allocation1 [shape = 'u32[144,128]{1,0:T(1,128)}', space=vmem, size = 0x12000, scoped, tag = 'internal scratch']
  %s0 = inlined_call_operand.vmem [shape: f32[8,16], index: 0, kind: input, shape index: {}]
  %s1 = inlined_call_operand.hbm [shape: f32[8,8], index: 1, kind: input, shape index: {}]
  %s2 = inlined_call_operand.hbm [shape: bf16[16,128], index: 2, kind: input, shape index: {}]
  %s3 = inlined_call_operand.hbm [shape: bf16[8,128], index: 3, kind: input, shape index: {}]
  %s4 = inlined_call_operand.vmem [shape: f32[1,128], index: 4, kind: input, shape index: {}]
  %s5 = inlined_call_operand.vmem [shape: bf16[128,128], index: 5, kind: input, shape index: {}]
  %s6 = inlined_call_operand.vmem [shape: f32[1,128], index: 6, kind: input, shape index: {}]
  %s7 = inlined_call_operand.vmem [shape: bf16[128,2], index: 7, kind: input, shape index: {}]
  %s8 = inlined_call_operand.vmem [shape: f32[1,2], index: 8, kind: input, shape index: {}]
  %s9 = inlined_call_operand.vmem [shape: f32[8,2], index: 9, kind: output, shape index: {}]
  %s10 = sld [smem:[#allocation0]]
  $region58: #{tpu_custom_call.1} parent=0
    _
  %s12 = ssub.s32 1, %s10
  %s13 = scalar_select 0, %s12, %s10
  $region1: #{tpu_custom_call.1} parent=0
    #allocation2 [shape = 'u8[4096]{0}', space=vmem, size = 0x1000, scoped, tag = 'input window, operand 1, single buffered']
    #allocation3 [shape = 's32[1]{0}', space=sflag, size = 0x4, scoped, tag = 'scoped memory for tpu_custom_call.1']
    #allocation4 [shape = 'u8[4096]{0}', space=vmem, size = 0x1000, scoped, tag = 'input window, operand 2, single buffered']
    #allocation5 [shape = 's32[1]{0}', space=sflag, size = 0x4, scoped, tag = 'scoped memory for tpu_custom_call.1']
    #allocation6 [shape = 'u8[2048]{0}', space=vmem, size = 0x800, scoped, tag = 'input window, operand 3, single buffered']
    %14 = vsyncpa [#allocation3], 0
    %15 = vsyncpa [#allocation5], 0
    // Predicated region
    $region2: #{tpu_custom_call.1} parent=1 // pred_check
      _
    $region3: #{tpu_custom_call.1} parent=1 // pred_check_branch
      %17 = sbr.rel (0) target = $region5
    $region4: #{tpu_custom_call.1} parent=1 // pred_region
      _
    $region5: #{tpu_custom_call.1} parent=1 // pred_fallthru
      _
    // Predicated region
    $region6: #{tpu_custom_call.1} parent=1 // pred_check
      _
    $region7: #{tpu_custom_call.1} parent=1 // pred_check_branch
      %19 = sbr.rel (0) target = $region9
    $region8: #{tpu_custom_call.1} parent=1 // pred_region
      %s21 = ssub.s32 128, 128
      %22 = vsyncadd [#allocation3], %s21
      %s24 = sshll.u32 [#allocation2], 4
      %s25 = int_to_ptr.vmem [resolvable:$true] %s24
      %27 = dma.hbm_to_vmem [thread:$0]  %s1, 128, %s25, [#allocation3]
    $region9: #{tpu_custom_call.1} parent=1 // pred_fallthru
      _
    // Predicated region
    $region10: #{tpu_custom_call.1} parent=1 // pred_check
      _
    $region11: #{tpu_custom_call.1} parent=1 // pred_check_branch
      %29 = sbr.rel (0) target = $region13
    $region12: #{tpu_custom_call.1} parent=1 // pred_region
      %s31 = ssub.s32 128, 128
      %32 = vsyncadd [#allocation5], %s31
      %s33 = sshll.u32 [#allocation4], 4
      %s34 = int_to_ptr.vmem [resolvable:$true] %s33
      %39 = dma.hbm_to_vmem [thread:$0]  %s2, 128, %s34, [#allocation5], 64, 64, 4
    $region13: #{tpu_custom_call.1} parent=1 // pred_fallthru
      _
    // Predicated region
    $region14: #{tpu_custom_call.1} parent=1 // pred_check
      _
    $region15: #{tpu_custom_call.1} parent=1 // pred_check_branch
      %41 = sbr.rel (0) target = $region17
    $region16: #{tpu_custom_call.1} parent=1 // pred_region
      %s43 = ssub.s32 64, 64
      %44 = vsyncadd [#allocation5], %s43
      %s46 = sshll.u32 [#allocation6], 4
      %s47 = int_to_ptr.vmem [resolvable:$true] %s46
      %49 = dma.hbm_to_vmem [thread:$0]  %s3, 64, %s47, [#allocation5]
    $region17: #{tpu_custom_call.1} parent=1 // pred_fallthru
      _
    // Predicated region
    $region18: #{tpu_custom_call.1} parent=1 // pred_check
      _
    $region19: #{tpu_custom_call.1} parent=1 // pred_check_branch
      %51 = sbr.rel (0) target = $region21
    $region20: #{tpu_custom_call.1} parent=1 // pred_region
      _
    $region21: #{tpu_custom_call.1} parent=1 // pred_fallthru
      _
    // Predicated region
    $region22: #{tpu_custom_call.1} parent=1 // pred_check
      _
    $region23: #{tpu_custom_call.1} parent=1 // pred_check_branch
      %53 = sbr.rel (0) target = $region25
    $region24: #{tpu_custom_call.1} parent=1 // pred_region
      _
    $region25: #{tpu_custom_call.1} parent=1 // pred_fallthru
      _
    // Predicated region
    $region26: #{tpu_custom_call.1} parent=1 // pred_check
      _
    $region27: #{tpu_custom_call.1} parent=1 // pred_check_branch
      %55 = sbr.rel (0) target = $region29
    $region28: #{tpu_custom_call.1} parent=1 // pred_region
      _
    $region29: #{tpu_custom_call.1} parent=1 // pred_fallthru
      _
    // Predicated region
    $region30: #{tpu_custom_call.1} parent=1 // pred_check
      _
    $region31: #{tpu_custom_call.1} parent=1 // pred_check_branch
      %57 = sbr.rel (0) target = $region33
    $region32: #{tpu_custom_call.1} parent=1 // pred_region
      _
    $region33: #{tpu_custom_call.1} parent=1 // pred_fallthru
      _
    // Predicated region
    $region34: #{tpu_custom_call.1} parent=1 // pred_check
      _
    $region35: #{tpu_custom_call.1} parent=1 // pred_check_branch
      %59 = sbr.rel (0) target = $region37
    $region36: #{tpu_custom_call.1} parent=1 // pred_region
      _
    $region37: #{tpu_custom_call.1} parent=1 // pred_fallthru
      _
    // Predicated region
    $region38: #{tpu_custom_call.1} parent=1 // pred_check
      _
    $region39: #{tpu_custom_call.1} parent=1 // pred_check_branch
      %61 = sbr.rel (0) target = $region41
    $region40: #{tpu_custom_call.1} parent=1 // pred_region
      %62 = dma.done [#allocation3], 128
    $region41: #{tpu_custom_call.1} parent=1 // pred_fallthru
      _
    // Predicated region
    $region42: #{tpu_custom_call.1} parent=1 // pred_check
      _
    $region43: #{tpu_custom_call.1} parent=1 // pred_check_branch
      %64 = sbr.rel (0) target = $region45
    $region44: #{tpu_custom_call.1} parent=1 // pred_region
      %65 = dma.done [#allocation5], 128
    $region45: #{tpu_custom_call.1} parent=1 // pred_fallthru
      _
    // Predicated region
    $region46: #{tpu_custom_call.1} parent=1 // pred_check
      _
    $region47: #{tpu_custom_call.1} parent=1 // pred_check_branch
      %67 = sbr.rel (0) target = $region49
    $region48: #{tpu_custom_call.1} parent=1 // pred_region
      %68 = dma.done [#allocation5], 64
    $region49: #{tpu_custom_call.1} parent=1 // pred_fallthru
      _
    %v70 = vld [vmem:[%s0] sm:$0xff]
    %v71 = vpack.c.bf16 %v70, %v70
    %v72 = vld [vmem:[#allocation2] sm:$0xff]
    %v73 = vpack.c.bf16 %v72, %v72
    %v74 = vld [vmem:[#allocation4] sm:$0xf]
    %v75 = vld [vmem:[#allocation4 + $0x4] sm:$0xf]
    %v76 = vld [vmem:[#allocation6] sm:$0xf]
    %vm77 = vcmask 64512
    %v79 = vsel %vm77, %v73, 0
    %vm81 = vcmask 1043456
    %v83 = vsel %vm81, %v76, 0
    %85 = vmatprep.subr.bf16.mxu0 0
    %86 = vmatpush1.bf16.msra.mxu0 0
    %87 = vmatprep.subr.bf16.mxu0 0
    %88 = vmatpush1.bf16.msra.mxu0 0
    %89 = vmatprep.subr.bf16.mxu0 0
    %90 = vmatpush1.bf16.msra.mxu0 0
    %91 = vmatprep.subr.bf16.mxu0 0
    %92 = vmatpush1.bf16.msra.mxu0 0
    %93 = vmatprep.subr.bf16.mxu0 0
    %94 = vmatpush1.bf16.msra.mxu0 0
    %95 = vmatprep.subr.bf16.mxu0 0
    %96 = vmatpush1.bf16.msra.mxu0 0
    %97 = vmatprep.subr.bf16.mxu0 0
    %98 = vmatpush1.bf16.msra.mxu0 0
    %99 = vmatprep.subr.bf16.mxu0 0
    %100 = vmatpush1.bf16.msra.mxu0 %v83
    %101 = vmatprep.subr.bf16.mxu0 0
    %102 = vmatpush2.bf16.msra.mxu0 0
    %103 = vmatprep.subr.bf16.mxu0 0
    %104 = vmatpush2.bf16.msra.mxu0 0
    %105 = vmatprep.subr.bf16.mxu0 0
    %106 = vmatpush2.bf16.msra.mxu0 0
    %107 = vmatprep.subr.bf16.mxu0 0
    %108 = vmatpush2.bf16.msra.mxu0 0
    %109 = vmatprep.subr.bf16.mxu0 0
    %110 = vmatpush2.bf16.msra.mxu0 0
    %111 = vmatprep.subr.bf16.mxu0 0
    %112 = vmatpush2.bf16.msra.mxu0 0
    %113 = vmatprep.subr.bf16.mxu0 0
    %114 = vmatpush2.bf16.msra.mxu0 0
    %115 = vmatprep.subr.bf16.mxu0 0
    %116 = vmatpush2.bf16.msra.mxu0 0
    %117 = vmatprep.mubr.bf16.mxu0 0
    %118 = vmatmul.mubr.bf16.gmra.mxu0 %v79
    %v119 = vpop.f32.mrf.mxu0
    %v120 = vadd.f32 0.0, %v119
    %v121 = vpop.f32.mrf.mxu0
    %v122 = vpop.f32.mrf.mxu0
    %v123 = vpop.f32.mrf.mxu0
    %124 = vdwg.mxu0
    %v127 = vunpack.c.l.b16 %v74
    %v128 = vunpack.c.l.b16 %v75
    %v129 = vpack.c.b16 %v128, %v127
    %vm131 = vcmask 130048
    %v133 = vsel %vm131, %v71, 0
    %135 = vmatprep.subr.bf16.mxu0 0
    %136 = vmatpush1.bf16.msra.mxu0 0
    %137 = vmatprep.subr.bf16.mxu0 0
    %138 = vmatpush1.bf16.msra.mxu0 0
    %139 = vmatprep.subr.bf16.mxu0 0
    %140 = vmatpush1.bf16.msra.mxu0 0
    %141 = vmatprep.subr.bf16.mxu0 0
    %142 = vmatpush1.bf16.msra.mxu0 0
    %143 = vmatprep.subr.bf16.mxu0 0
    %144 = vmatpush1.bf16.msra.mxu0 0
    %145 = vmatprep.subr.bf16.mxu0 0
    %146 = vmatpush1.bf16.msra.mxu0 0
    %147 = vmatprep.subr.bf16.mxu0 0
    %148 = vmatpush1.bf16.msra.mxu0 0
    %149 = vmatprep.subr.bf16.mxu0 0
    %150 = vmatpush1.bf16.msra.mxu0 %v129
    %151 = vmatprep.subr.bf16.mxu0 0
    %152 = vmatpush2.bf16.msra.mxu0 0
    %153 = vmatprep.subr.bf16.mxu0 0
    %154 = vmatpush2.bf16.msra.mxu0 0
    %155 = vmatprep.subr.bf16.mxu0 0
    %156 = vmatpush2.bf16.msra.mxu0 0
    %157 = vmatprep.subr.bf16.mxu0 0
    %158 = vmatpush2.bf16.msra.mxu0 0
    %159 = vmatprep.subr.bf16.mxu0 0
    %160 = vmatpush2.bf16.msra.mxu0 0
    %161 = vmatprep.subr.bf16.mxu0 0
    %162 = vmatpush2.bf16.msra.mxu0 0
    %163 = vmatprep.subr.bf16.mxu0 0
    %164 = vmatpush2.bf16.msra.mxu0 0
    %165 = vmatprep.subr.bf16.mxu0 0
    %166 = vmatpush2.bf16.msra.mxu0 0
    %167 = vmatprep.mubr.bf16.mxu0 0
    %168 = vmatmul.mubr.bf16.gmra.mxu0 %v133
    %v169 = vpop.f32.mrf.mxu0
    %v170 = vadd.f32 %v120, %v169
    %v171 = vpop.f32.mrf.mxu0
    %v172 = vpop.f32.mrf.mxu0
    %v173 = vpop.f32.mrf.mxu0
    %174 = vdwg.mxu0
    %v175 = vld [vmem:[%s4] sm:$0x1]
    %v177 = vlaneseq
    %v178 = vshrl.u32 %v177, 7
    %v179 = vsub.s32 0, %v178
    %v180 = vrot.slane %v175, %v179
    %v182 = vadd.f32 %v170, %v180
    %v183 = vmax.f32 %v182, 0.0
    %v184 = vpack.c.bf16 %v183, %v183
    %v185 = vld [vmem:[%s5] sm:$0xf]
    %v186 = vld [vmem:[%s5 + $0x4] sm:$0xf]
    %v187 = vld [vmem:[%s5 + $0x8] sm:$0xf]
    %v188 = vld [vmem:[%s5 + $0xc] sm:$0xf]
    %v189 = vld [vmem:[%s5 + $0x10] sm:$0xf]
    %v190 = vld [vmem:[%s5 + $0x14] sm:$0xf]
    %v191 = vld [vmem:[%s5 + $0x18] sm:$0xf]
    %v192 = vld [vmem:[%s5 + $0x1c] sm:$0xf]
    %v193 = vld [vmem:[%s5 + $0x20] sm:$0xf]
    %v194 = vld [vmem:[%s5 + $0x24] sm:$0xf]
    %v195 = vld [vmem:[%s5 + $0x28] sm:$0xf]
    %v196 = vld [vmem:[%s5 + $0x2c] sm:$0xf]
    %v197 = vld [vmem:[%s5 + $0x30] sm:$0xf]
    %v198 = vld [vmem:[%s5 + $0x34] sm:$0xf]
    %v199 = vld [vmem:[%s5 + $0x38] sm:$0xf]
    %v200 = vld [vmem:[%s5 + $0x3c] sm:$0xf]
    %v201 = vld [vmem:[%s6] sm:$0x1]
    %v203 = vlaneseq
    %v204 = vshrl.u32 %v203, 7
    %v205 = vsub.s32 0, %v204
    %v206 = vrot.slane %v201, %v205
    %v224 = vunpack.c.l.b16 %v185
    %v225 = vunpack.c.l.b16 %v186
    %v226 = vunpack.c.l.b16 %v187
    %v227 = vunpack.c.l.b16 %v188
    %v228 = vunpack.c.l.b16 %v189
    %v229 = vunpack.c.l.b16 %v190
    %v230 = vunpack.c.l.b16 %v191
    %v231 = vunpack.c.l.b16 %v192
    %v232 = vunpack.c.l.b16 %v193
    %v233 = vunpack.c.l.b16 %v194
    %v234 = vunpack.c.l.b16 %v195
    %v235 = vunpack.c.l.b16 %v196
    %v236 = vunpack.c.l.b16 %v197
    %v237 = vunpack.c.l.b16 %v198
    %v238 = vunpack.c.l.b16 %v199
    %v239 = vunpack.c.l.b16 %v200
    %v240 = vpack.c.b16 %v225, %v224
    %v241 = vpack.c.b16 %v227, %v226
    %v242 = vpack.c.b16 %v229, %v228
    %v243 = vpack.c.b16 %v231, %v230
    %v244 = vpack.c.b16 %v233, %v232
    %v245 = vpack.c.b16 %v235, %v234
    %v246 = vpack.c.b16 %v237, %v236
    %v247 = vpack.c.b16 %v239, %v238
    %256 = vmatprep.subr.bf16.mxu0 0
    %257 = vmatpush1.bf16.msra.mxu0 %v247
    %258 = vmatprep.subr.bf16.mxu0 0
    %259 = vmatpush1.bf16.msra.mxu0 %v246
    %260 = vmatprep.subr.bf16.mxu0 0
    %261 = vmatpush1.bf16.msra.mxu0 %v245
    %262 = vmatprep.subr.bf16.mxu0 0
    %263 = vmatpush1.bf16.msra.mxu0 %v244
    %264 = vmatprep.subr.bf16.mxu0 0
    %265 = vmatpush1.bf16.msra.mxu0 %v243
    %266 = vmatprep.subr.bf16.mxu0 0
    %267 = vmatpush1.bf16.msra.mxu0 %v242
    %268 = vmatprep.subr.bf16.mxu0 0
    %269 = vmatpush1.bf16.msra.mxu0 %v241
    %270 = vmatprep.subr.bf16.mxu0 0
    %271 = vmatpush1.bf16.msra.mxu0 %v240
    %272 = vmatprep.subr.bf16.mxu0 0
    %273 = vmatpush2.bf16.msra.mxu0 0
    %274 = vmatprep.subr.bf16.mxu0 0
    %275 = vmatpush2.bf16.msra.mxu0 0
    %276 = vmatprep.subr.bf16.mxu0 0
    %277 = vmatpush2.bf16.msra.mxu0 0
    %278 = vmatprep.subr.bf16.mxu0 0
    %279 = vmatpush2.bf16.msra.mxu0 0
    %280 = vmatprep.subr.bf16.mxu0 0
    %281 = vmatpush2.bf16.msra.mxu0 0
    %282 = vmatprep.subr.bf16.mxu0 0
    %283 = vmatpush2.bf16.msra.mxu0 0
    %284 = vmatprep.subr.bf16.mxu0 0
    %285 = vmatpush2.bf16.msra.mxu0 0
    %286 = vmatprep.subr.bf16.mxu0 0
    %287 = vmatpush2.bf16.msra.mxu0 0
    %288 = vmatprep.mubr.bf16.mxu0 0
    %289 = vmatmul.mubr.bf16.gmra.mxu0 %v184
    %v290 = vpop.f32.mrf.mxu0
    %v291 = vadd.f32 %v206, %v290
    %v292 = vpop.f32.mrf.mxu0
    %v293 = vpop.f32.mrf.mxu0
    %v294 = vpop.f32.mrf.mxu0
    %295 = vdwg.mxu0
    %v296 = vmax.f32 %v291, 0.0
    %v297 = vpack.c.bf16 %v296, %v296
    %v298 = vld [vmem:[%s7] sm:$0xf]
    %v299 = vld [vmem:[%s7 + $0x4] sm:$0xf]
    %v300 = vld [vmem:[%s7 + $0x8] sm:$0xf]
    %v301 = vld [vmem:[%s7 + $0xc] sm:$0xf]
    %v302 = vld [vmem:[%s7 + $0x10] sm:$0xf]
    %v303 = vld [vmem:[%s7 + $0x14] sm:$0xf]
    %v304 = vld [vmem:[%s7 + $0x18] sm:$0xf]
    %v305 = vld [vmem:[%s7 + $0x1c] sm:$0xf]
    %v306 = vld [vmem:[%s7 + $0x20] sm:$0xf]
    %v307 = vld [vmem:[%s7 + $0x24] sm:$0xf]
    %v308 = vld [vmem:[%s7 + $0x28] sm:$0xf]
    %v309 = vld [vmem:[%s7 + $0x2c] sm:$0xf]
    %v310 = vld [vmem:[%s7 + $0x30] sm:$0xf]
    %v311 = vld [vmem:[%s7 + $0x34] sm:$0xf]
    %v312 = vld [vmem:[%s7 + $0x38] sm:$0xf]
    %v313 = vld [vmem:[%s7 + $0x3c] sm:$0xf]
    %v314 = vld [vmem:[%s8] sm:$0x1]
    %v316 = vlaneseq
    %v317 = vshrl.u32 %v316, 7
    %v318 = vsub.s32 0, %v317
    %v319 = vrot.slane %v314, %v318
    %v337 = vunpack.c.l.b16 %v298
    %v338 = vunpack.c.l.b16 %v299
    %v339 = vunpack.c.l.b16 %v300
    %v340 = vunpack.c.l.b16 %v301
    %v341 = vunpack.c.l.b16 %v302
    %v342 = vunpack.c.l.b16 %v303
    %v343 = vunpack.c.l.b16 %v304
    %v344 = vunpack.c.l.b16 %v305
    %v345 = vunpack.c.l.b16 %v306
    %v346 = vunpack.c.l.b16 %v307
    %v347 = vunpack.c.l.b16 %v308
    %v348 = vunpack.c.l.b16 %v309
    %v349 = vunpack.c.l.b16 %v310
    %v350 = vunpack.c.l.b16 %v311
    %v351 = vunpack.c.l.b16 %v312
    %v352 = vunpack.c.l.b16 %v313
    %v353 = vpack.c.b16 %v338, %v337
    %v354 = vpack.c.b16 %v340, %v339
    %v355 = vpack.c.b16 %v342, %v341
    %v356 = vpack.c.b16 %v344, %v343
    %v357 = vpack.c.b16 %v346, %v345
    %v358 = vpack.c.b16 %v348, %v347
    %v359 = vpack.c.b16 %v350, %v349
    %v360 = vpack.c.b16 %v352, %v351
    %369 = vmatprep.subr.bf16.mxu0 0
    %370 = vmatpush1.bf16.msra.mxu0 %v360
    %371 = vmatprep.subr.bf16.mxu0 0
    %372 = vmatpush1.bf16.msra.mxu0 %v359
    %373 = vmatprep.subr.bf16.mxu0 0
    %374 = vmatpush1.bf16.msra.mxu0 %v358
    %375 = vmatprep.subr.bf16.mxu0 0
    %376 = vmatpush1.bf16.msra.mxu0 %v357
    %377 = vmatprep.subr.bf16.mxu0 0
    %378 = vmatpush1.bf16.msra.mxu0 %v356
    %379 = vmatprep.subr.bf16.mxu0 0
    %380 = vmatpush1.bf16.msra.mxu0 %v355
    %381 = vmatprep.subr.bf16.mxu0 0
    %382 = vmatpush1.bf16.msra.mxu0 %v354
    %383 = vmatprep.subr.bf16.mxu0 0
    %384 = vmatpush1.bf16.msra.mxu0 %v353
    %385 = vmatprep.subr.bf16.mxu0 0
    %386 = vmatpush2.bf16.msra.mxu0 0
    %387 = vmatprep.subr.bf16.mxu0 0
    %388 = vmatpush2.bf16.msra.mxu0 0
    %389 = vmatprep.subr.bf16.mxu0 0
    %390 = vmatpush2.bf16.msra.mxu0 0
    %391 = vmatprep.subr.bf16.mxu0 0
    %392 = vmatpush2.bf16.msra.mxu0 0
    %393 = vmatprep.subr.bf16.mxu0 0
    %394 = vmatpush2.bf16.msra.mxu0 0
    %395 = vmatprep.subr.bf16.mxu0 0
    %396 = vmatpush2.bf16.msra.mxu0 0
    %397 = vmatprep.subr.bf16.mxu0 0
    %398 = vmatpush2.bf16.msra.mxu0 0
    %399 = vmatprep.subr.bf16.mxu0 0
    %400 = vmatpush2.bf16.msra.mxu0 0
    %401 = vmatprep.mubr.bf16.mxu0 0
    %402 = vmatmul.mubr.bf16.gmra.mxu0 %v297
    %v403 = vpop.f32.mrf.mxu0
    %v404 = vadd.f32 %v319, %v403
    %v405 = vpop.f32.mrf.mxu0
    %v406 = vpop.f32.mrf.mxu0
    %v407 = vpop.f32.mrf.mxu0
    %408 = vdwg.mxu0
    %vm409 = vcmask 15360
    %410 = vst.msk [vmem:[%s9] sm:$0xff] %vm409, %v404
    // Predicated region
    $region50: #{tpu_custom_call.1} parent=1 // pred_check
      _
    $region51: #{tpu_custom_call.1} parent=1 // pred_check_branch
      %412 = sbr.rel (0) target = $region53
    $region52: #{tpu_custom_call.1} parent=1 // pred_region
      _
    $region53: #{tpu_custom_call.1} parent=1 // pred_fallthru
      _
    // Predicated region
    $region54: #{tpu_custom_call.1} parent=1 // pred_check
      _
    $region55: #{tpu_custom_call.1} parent=1 // pred_check_branch
      %414 = sbr.rel (0) target = $region57
    $region56: #{tpu_custom_call.1} parent=1 // pred_region
      _
    $region57: #{tpu_custom_call.1} parent=1 // pred_fallthru
      _
    %415 = vsyncpa [#allocation3], 1
    %416 = vsyncpa [#allocation5], 1

</llo_original>
